<compile_context>
chip_gen: v5e
topology: v5e:2x2
jax: 0.10.0
libtpu: 0.0.40
codegen_flags: <defaults>
</compile_context>

<pallas_src>
import functools
import math

import jax
import jax.numpy as jnp
from jax import lax
from jax.experimental import pallas as pl
from jax.experimental.pallas import tpu as pltpu

PAD_ID = 0
MASK_ID = 3


# ----------------------------------------------------------------------------
# Hardware-gated tiling config
# ----------------------------------------------------------------------------
def _hw_config():
    """Returns (f32_tile_budget_bytes, row_cap, vmem_limit_bytes) gated on physical VMEM."""
    try:
        vmem_cap = int(pltpu.get_tpu_info().vmem_capacity_bytes)
    except Exception:
        vmem_cap = 64 << 20                       # conservative fallback
    if vmem_cap >= (96 << 20):                    # v5e / v6e: 128 MiB VMEM
        return (6 << 20), 8192, (64 << 20)
    return (3 << 20), 2048, (32 << 20)            # v7x-class: 64 MiB per TensorCore


def _choose_row_tile(n, v):
    """Row-tile (multiple of 8, <= n-ish) sized against the f32 working-set budget."""
    f32_budget, row_cap, _ = _hw_config()
    if n <= 8:
        return max(1, n)                          # full-extent block (allowed for any n)
    t = max(8, min(row_cap, f32_budget // max(1, 4 * v)))
    t = (t // 8) * 8
    t = min(t, (n // 8) * 8)                      # never exceed the array row extent
    return max(8, t)


def _grid_config(n, tile):
    n_blocks = pl.cdiv(n, tile)
    ncores = 2 if n_blocks > 1 else 1             # megacore split (cheap no-op on 1-TC chips)
    tiles_per_core = pl.cdiv(n_blocks, ncores)
    last_blk = n_blocks - 1
    return ncores, tiles_per_core, last_blk


# ----------------------------------------------------------------------------
# Kernel 1: label-smoothing KL loss (LabelSmoothingLoss forward, sum over rows)
# ----------------------------------------------------------------------------
def _ls_kl_kernel(logits_ref, target_ref, out_ref, *,
                  k_const, lse_coef, t_coef, smooth, ig_col, ignore_index,
                  n_rows, tiles_per_core):
    c = pl.program_id(0)
    i = pl.program_id(1)

    @pl.when(i == 0)
    def _():
        out_ref[...] = jnp.zeros_like(out_ref)

    x = logits_ref[...].astype(jnp.float32)            # (tN, V) -- cast in-vreg
    t = target_ref[...]                                 # (tN, 1) int32
    tn, v = x.shape

    # Row-wise logsumexp (single fused full-width pass over x).
    m = jnp.max(x, axis=-1, keepdims=True)
    lse = jnp.log(jnp.sum(jnp.exp(x - m), axis=-1, keepdims=True)) + m   # (tN, 1)

    rowsum = jnp.sum(x, axis=-1, keepdims=True)                          # (tN, 1)
    cls = lax.broadcasted_iota(jnp.int32, (tn, v), 1)
    x_t = jnp.sum(jnp.where(cls == t, x, 0.0), axis=-1, keepdims=True)   # logit at target
    x_ig = x[:, ig_col:ig_col + 1]                                       # static lane slice

    # Closed-form per-row KL: only (tN, 1) column algebra remains.
    kl_row = k_const + lse_coef * lse - t_coef * x_t - smooth * rowsum + smooth * x_ig

    # Mask ignored rows and rows past the true row count (tail / clamped duplicate blocks).
    row0 = (c * tiles_per_core + i) * tn
    rid = row0 + lax.broadcasted_iota(jnp.int32, (tn, 1), 0)
    valid = jnp.logical_and(t != ignore_index, rid < n_rows)

    # Scalar partial, broadcast-added to the per-core (1, 8, 128) accumulator block.
    out_ref[...] += jnp.sum(jnp.where(valid, kl_row, 0.0))


def label_smoothing_kl_loss(logits2d, target1d, label_smoothing, vocab_size, ignore_index):
    n, v = logits2d.shape
    assert vocab_size > 2, "label smoothing needs vocab_size > 2"
    itemsize = jnp.dtype(logits2d.dtype).itemsize
    tile = _choose_row_tile(n, v)
    ncores, tiles_per_core, last_blk = _grid_config(n, tile)
    _, _, vmem_limit = _hw_config()

    smooth = float(label_smoothing) / (vocab_size - 2)
    conf = 1.0 - float(label_smoothing)
    k_const = ((conf * math.log(conf) if conf > 0.0 else 0.0)
               + ((v - 2) * smooth * math.log(smooth) if smooth > 0.0 else 0.0))
    lse_coef = conf + (v - 2) * smooth
    t_coef = conf - smooth
    ig_col = ignore_index if ignore_index >= 0 else v + ignore_index
    assert 0 <= ig_col < v, "ignore_index must address a vocab column for label smoothing"

    kernel = functools.partial(
        _ls_kl_kernel, k_const=k_const, lse_coef=lse_coef, t_coef=t_coef,
        smooth=smooth, ig_col=int(ig_col), ignore_index=int(ignore_index),
        n_rows=int(n), tiles_per_core=int(tiles_per_core))

    def row_blk(c, i):  # clamp: extra per-core blocks re-read the last block (masked in-kernel)
        return jnp.minimum(c * tiles_per_core + i, last_blk)

    cost = pl.CostEstimate(flops=int(6 * n * v), transcendentals=int(n * v),
                           bytes_accessed=int(n * v * itemsize + 4 * n))
    partials = pl.pallas_call(
        kernel,
        out_shape=jax.ShapeDtypeStruct((ncores, 8, 128), jnp.float32),
        grid=(ncores, tiles_per_core),
        in_specs=[pl.BlockSpec((tile, v), lambda c, i: (row_blk(c, i), 0)),
                  pl.BlockSpec((tile, 1), lambda c, i: (row_blk(c, i), 0))],
        out_specs=pl.BlockSpec((1, 8, 128), lambda c, i: (c, 0, 0)),
        compiler_params=pltpu.CompilerParams(
            dimension_semantics=("parallel", "arbitrary"),
            vmem_limit_bytes=vmem_limit),
        cost_estimate=cost,
    )(logits2d, target1d.astype(jnp.int32).reshape(n, 1))
    return partials[:, 0, 0].sum() / jnp.float32(n)     # reduction='batchmean' over ALL rows


# ----------------------------------------------------------------------------
# Kernel 2: plain cross-entropy (label_smoothing == 0 path), reduction='mean'
# ----------------------------------------------------------------------------
def _ce_kernel(logits_ref, target_ref, nll_ref, cnt_ref, *,
               ignore_index, n_rows, tiles_per_core):
    c = pl.program_id(0)
    i = pl.program_id(1)

    @pl.when(i == 0)
    def _():
        nll_ref[...] = jnp.zeros_like(nll_ref)
        cnt_ref[...] = jnp.zeros_like(cnt_ref)

    x = logits_ref[...].astype(jnp.float32)             # (tN, C)
    t = target_ref[...]                                  # (tN, 1)
    tn, v = x.shape

    m = jnp.max(x, axis=-1, keepdims=True)
    lse = jnp.log(jnp.sum(jnp.exp(x - m), axis=-1, keepdims=True)) + m

    cls = lax.broadcasted_iota(jnp.int32, (tn, v), 1)
    x_t = jnp.sum(jnp.where(cls == t, x, 0.0), axis=-1, keepdims=True)   # logit at target

    row0 = (c * tiles_per_core + i) * tn
    rid = row0 + lax.broadcasted_iota(jnp.int32, (tn, 1), 0)
    valid = jnp.logical_and(t != ignore_index, rid < n_rows)

    nll_ref[...] += jnp.sum(jnp.where(valid, lse - x_t, 0.0))
    cnt_ref[...] += jnp.sum(valid.astype(jnp.float32))


def cross_entropy_loss(logits2d, target1d, ignore_index):
    n, v = logits2d.shape
    itemsize = jnp.dtype(logits2d.dtype).itemsize
    tile = _choose_row_tile(n, v)
    ncores, tiles_per_core, last_blk = _grid_config(n, tile)
    _, _, vmem_limit = _hw_config()

    kernel = functools.partial(_ce_kernel, ignore_index=int(ignore_index),
                               n_rows=int(n), tiles_per_core=int(tiles_per_core))

    def row_blk(c, i):
        return jnp.minimum(c * tiles_per_core + i, last_blk)

    cost = pl.CostEstimate(flops=int(5 * n * v), transcendentals=int(n * v),
                           bytes_accessed=int(n * v * itemsize + 4 * n))
    acc_spec = pl.BlockSpec((1, 8, 128), lambda c, i: (c, 0, 0))
    nll, cnt = pl.pallas_call(
        kernel,
        out_shape=(jax.ShapeDtypeStruct((ncores, 8, 128), jnp.float32),
                   jax.ShapeDtypeStruct((ncores, 8, 128), jnp.float32)),
        grid=(ncores, tiles_per_core),
        in_specs=[pl.BlockSpec((tile, v), lambda c, i: (row_blk(c, i), 0)),
                  pl.BlockSpec((tile, 1), lambda c, i: (row_blk(c, i), 0))],
        out_specs=(acc_spec, acc_spec),
        compiler_params=pltpu.CompilerParams(
            dimension_semantics=("parallel", "arbitrary"),
            vmem_limit_bytes=vmem_limit),
        cost_estimate=cost,
    )(logits2d, target1d.astype(jnp.int32).reshape(n, 1))
    num = nll[:, 0, 0].sum()
    den = cnt[:, 0, 0].sum()
    den_safe = jnp.where(den > 0, den, 1.0)
    return jnp.where(den > 0, num / den_safe, 0.0)       # guard for all-ignored microbatches


# ----------------------------------------------------------------------------
# SequenceLoss module (JAX glue mirroring the PyTorch module)
# ----------------------------------------------------------------------------
class SequenceLoss:
    """SequenceLoss.forward: (batch, len, vocab) logits, (batch, len) targets -> scalar loss."""

    def __init__(self, label_smoothing, vocab_size, ignore_index=-100, ignore_indices=()):
        self.label_smoothing = float(label_smoothing)
        self.vocab_size = int(vocab_size)
        self.ignore_index = int(ignore_index)
        self.ignore_indices = tuple(ignore_indices)

    def __call__(self, output, target):
        b, l, v = output.shape
        out2d = output.reshape(-1, v)
        tgt = target.reshape(-1).astype(jnp.int32)
        for idx in self.ignore_indices:
            if idx != self.ignore_index:
                tgt = jnp.where(tgt == idx, self.ignore_index, tgt)
        if self.label_smoothing == 0:
            return cross_entropy_loss(out2d, tgt, self.ignore_index)
        return label_smoothing_kl_loss(out2d, tgt, self.label_smoothing,
                                       self.vocab_size, self.ignore_index)


# ----------------------------------------------------------------------------
# Pure-JAX references (for correctness checking only)
# ----------------------------------------------------------------------------
def _ref_ls_kl(logits2d, tgt, ls, v, ig):
    logq = jax.nn.log_softmax(logits2d.astype(jnp.float32), -1)
    n = logits2d.shape[0]
    sm = ls / (v - 2)
    conf = 1.0 - ls
    cls = jnp.arange(v)[None, :]
    is_t = cls == tgt[:, None]
    p = jnp.where(is_t, conf, sm)
    p = jnp.where((cls == ig) & ~is_t, 0.0, p)
    p = jnp.where((tgt == ig)[:, None], 0.0, p)
    kl = jnp.where(p > 0, p * (jnp.log(jnp.where(p > 0, p, 1.0)) - logq), 0.0)
    return kl.sum() / n


def _ref_ce(logits2d, tgt, ig):
    logq = jax.nn.log_softmax(logits2d.astype(jnp.float32), -1)
    valid = tgt != ig
    tsafe = jnp.where(valid, tgt, 0)
    nll = -jnp.take_along_axis(logq, tsafe[:, None], 1)[:, 0]
    return (nll * valid).sum() / valid.sum()


# ----------------------------------------------------------------------------
if __name__ == "__main__":
    key = jax.random.PRNGKey(0)
    k = jax.random.split(key, 6)
    label_smoothing = 0.1

    # ---- small sequence-format inputs (single-tile path) ----
    B, L, V = 2, 8, 32
    seq_logits = jax.random.normal(k[0], (B, L, V), jnp.float32)
    seq_tgt = jax.random.randint(k[1], (B, L), 0, V, jnp.int32)
    seq_tgt = seq_tgt.at[0, -2:].set(PAD_ID).at[1, -1].set(MASK_ID)

    loss_smooth = SequenceLoss(label_smoothing, V, ignore_index=PAD_ID,
                               ignore_indices=(PAD_ID, MASK_ID))
    loss_plain = SequenceLoss(0.0, V, ignore_index=PAD_ID,
                              ignore_indices=(PAD_ID, MASK_ID))

    out_smooth = jax.block_until_ready(loss_smooth(seq_logits, seq_tgt))
    out_plain = jax.block_until_ready(loss_plain(seq_logits, seq_tgt))

    tgt_flat = seq_tgt.reshape(-1)
    tgt_flat = jnp.where(tgt_flat == MASK_ID, PAD_ID, tgt_flat)
    ref_smooth = _ref_ls_kl(seq_logits.reshape(-1, V), tgt_flat, label_smoothing, V, PAD_ID)
    ref_plain = _ref_ce(seq_logits.reshape(-1, V), tgt_flat, PAD_ID)
    assert jnp.allclose(out_smooth, ref_smooth, rtol=1e-3, atol=1e-4), (out_smooth, ref_smooth)
    assert jnp.allclose(out_plain, ref_plain, rtol=1e-3, atol=1e-4), (out_plain, ref_plain)

    # ---- larger, non-8-aligned inputs: multi-block grid, megacore axis, tail masking, bf16 ----
    B2, L2, V2 = 4, 2049, 128            # N = 8196 rows (not a multiple of the row tile)
    big_logits = jax.random.normal(k[2], (B2, L2, V2), jnp.bfloat16)
    big_tgt = jax.random.randint(k[3], (B2, L2), 0, V2, jnp.int32)
    big_tgt = big_tgt.at[:, -17:].set(PAD_ID).at[:, 0].set(MASK_ID)

    big_smooth = SequenceLoss(label_smoothing, V2, ignore_index=PAD_ID,
                              ignore_indices=(PAD_ID, MASK_ID))
    big_plain = SequenceLoss(0.0, V2, ignore_index=PAD_ID,
                             ignore_indices=(PAD_ID, MASK_ID))
    out_big_s = jax.block_until_ready(big_smooth(big_logits, big_tgt))
    out_big_p = jax.block_until_ready(big_plain(big_logits, big_tgt))

    big_tgt_flat = big_tgt.reshape(-1)
    big_tgt_flat = jnp.where(big_tgt_flat == MASK_ID, PAD_ID, big_tgt_flat)
    ref_big_s = _ref_ls_kl(big_logits.reshape(-1, V2), big_tgt_flat, label_smoothing, V2, PAD_ID)
    ref_big_p = _ref_ce(big_logits.reshape(-1, V2), big_tgt_flat, PAD_ID)
    assert jnp.allclose(out_big_s, ref_big_s, rtol=2e-3, atol=1e-3), (out_big_s, ref_big_s)
    assert jnp.allclose(out_big_p, ref_big_p, rtol=2e-3, atol=1e-3), (out_big_p, ref_big_p)

    print("KERNEL_OK")
</pallas_src>

<mosaic_0001>
module attributes {stable_mosaic.version = 11 : i64} {
  func.func @_ls_kl_kernel(%arg0: i32, %arg1: i32, %arg2: memref<16x32xf32, #tpu.memory_space<vmem>>, %arg3: memref<16x1xi32, #tpu.memory_space<vmem>>, %arg4: memref<1x8x128xf32, #tpu.memory_space<vmem>>) attributes {dimension_semantics = [#tpu.dimension_semantics<parallel>, #tpu.dimension_semantics<arbitrary>], iteration_bounds = array<i64: 1, 1>, scalar_prefetch = 0 : i64, scratch_operands = 0 : i64, tpu.core_type = #tpu.core_type<tc>, window_params = [{transform_indices = @transform_0, window_bounds = array<i64: 16, 32>}, {transform_indices = @transform_1, window_bounds = array<i64: 16, 1>}, {transform_indices = @transform_2, window_bounds = array<i64: 1, 8, 128>}]} {
    %c0_i32 = arith.constant 0 : i32
    %0 = arith.cmpi eq, %arg1, %c0_i32 : i32
    %1 = arith.extui %0 : i1 to i32
    %c0_i32_0 = arith.constant 0 : i32
    %2 = arith.cmpi ne, %1, %c0_i32_0 : i32
    scf.if %2 {
      %cst_23 = arith.constant 0.000000e+00 : f32
      %58 = vector.broadcast %cst_23 : f32 to vector<1x8x128xf32>
      %c0_24 = arith.constant 0 : index
      %c0_25 = arith.constant 0 : index
      %c0_26 = arith.constant 0 : index
      %59 = vector.load %arg4[%c0_24, %c0_25, %c0_26] : memref<1x8x128xf32, #tpu.memory_space<vmem>>, vector<1x8x128xf32>
      tpu.vector_store %arg4[%c0_24, %c0_25, %c0_26], %58 {strides = array<i32>} : memref<1x8x128xf32, #tpu.memory_space<vmem>>, vector<1x8x128xf32>,
    } else {
    }
    %c0 = arith.constant 0 : index
    %c0_1 = arith.constant 0 : index
    %3 = vector.load %arg2[%c0, %c0_1] : memref<16x32xf32, #tpu.memory_space<vmem>>, vector<16x32xf32>
    %c0_2 = arith.constant 0 : index
    %c0_3 = arith.constant 0 : index
    %4 = vector.load %arg3[%c0_2, %c0_3] : memref<16x1xi32, #tpu.memory_space<vmem>>, vector<16x1xi32>
    %cst = arith.constant dense<0xFF800000> : vector<16xf32>
    %5 = vector.multi_reduction <maximumf>, %3, %cst [1] : vector<16x32xf32> to vector<16xf32>
    %6 = vector.shape_cast %5 : vector<16xf32> to vector<16x1xf32>
    %7 = vector.broadcast %6 : vector<16x1xf32> to vector<16x32xf32>
    %8 = arith.subf %3, %7 : vector<16x32xf32>
    %9 = math.exp %8 : vector<16x32xf32>
    %cst_4 = arith.constant dense<0.000000e+00> : vector<16xf32>
    %10 = vector.multi_reduction <add>, %9, %cst_4 [1] : vector<16x32xf32> to vector<16xf32>
    %11 = vector.shape_cast %10 : vector<16xf32> to vector<16x1xf32>
    %12 = math.log %11 : vector<16x1xf32>
    %13 = arith.addf %12, %6 : vector<16x1xf32>
    %cst_5 = arith.constant dense<0.000000e+00> : vector<16xf32>
    %14 = vector.multi_reduction <add>, %3, %cst_5 [1] : vector<16x32xf32> to vector<16xf32>
    %15 = vector.shape_cast %14 : vector<16xf32> to vector<16x1xf32>
    %16 = tpu.iota {dimensions = array<i32: 1>} : vector<16x32xi32>
    %17 = vector.broadcast %4 : vector<16x1xi32> to vector<16x32xi32>
    %18 = arith.cmpi eq, %16, %17 : vector<16x32xi32>
    %cst_6 = arith.constant 0.000000e+00 : f32
    %19 = vector.broadcast %cst_6 : f32 to vector<16x32xf32>
    %20 = arith.select %18, %3, %19 : vector<16x32xi1>, vector<16x32xf32>
    %cst_7 = arith.constant dense<0.000000e+00> : vector<16xf32>
    %21 = vector.multi_reduction <add>, %20, %cst_7 [1] : vector<16x32xf32> to vector<16xf32>
    %22 = vector.shape_cast %21 : vector<16xf32> to vector<16x1xf32>
    %23 = vector.extract_strided_slice %3 {offsets = [0, 0], sizes = [16, 1], strides = [1, 1]} : vector<16x32xf32> to vector<16x1xf32>
    %cst_8 = arith.constant 1.000000e+00 : f32
    %24 = vector.broadcast %cst_8 : f32 to vector<16x1xf32>
    %25 = arith.mulf %24, %13 : vector<16x1xf32>
    %cst_9 = arith.constant -0.665202737 : f32
    %26 = vector.broadcast %cst_9 : f32 to vector<16x1xf32>
    %27 = arith.addf %26, %25 : vector<16x1xf32>
    %cst_10 = arith.constant 0.896666646 : f32
    %28 = vector.broadcast %cst_10 : f32 to vector<16x1xf32>
    %29 = arith.mulf %28, %22 : vector<16x1xf32>
    %30 = arith.subf %27, %29 : vector<16x1xf32>
    %cst_11 = arith.constant 0.00333333341 : f32
    %31 = vector.broadcast %cst_11 : f32 to vector<16x1xf32>
    %32 = arith.mulf %31, %15 : vector<16x1xf32>
    %33 = arith.subf %30, %32 : vector<16x1xf32>
    %cst_12 = arith.constant 0.00333333341 : f32
    %34 = vector.broadcast %cst_12 : f32 to vector<16x1xf32>
    %35 = arith.mulf %34, %23 : vector<16x1xf32>
    %36 = arith.addf %33, %35 : vector<16x1xf32>
    %c1_i32 = arith.constant 1 : i32
    %37 = arith.muli %arg0, %c1_i32 : i32
    %38 = arith.addi %37, %arg1 : i32
    %c16_i32 = arith.constant 16 : i32
    %39 = arith.muli %38, %c16_i32 : i32
    %40 = tpu.iota {dimensions = array<i32: 0>} : vector<16x1xi32>
    %41 = vector.broadcast %39 : i32 to vector<16x1xi32>
    %42 = arith.addi %41, %40 : vector<16x1xi32>
    %c0_i32_13 = arith.constant 0 : i32
    %43 = vector.broadcast %c0_i32_13 : i32 to vector<16x1xi32>
    %44 = arith.cmpi ne, %4, %43 : vector<16x1xi32>
    %c16_i32_14 = arith.constant 16 : i32
    %45 = vector.broadcast %c16_i32_14 : i32 to vector<16x1xi32>
    %46 = arith.cmpi slt, %42, %45 : vector<16x1xi32>
    %47 = arith.andi %44, %46 : vector<16x1xi1>
    %c0_15 = arith.constant 0 : index
    %c0_16 = arith.constant 0 : index
    %c0_17 = arith.constant 0 : index
    %48 = vector.load %arg4[%c0_15, %c0_16, %c0_17] : memref<1x8x128xf32, #tpu.memory_space<vmem>>, vector<1x8x128xf32>
    %cst_18 = arith.constant 0.000000e+00 : f32
    %49 = vector.broadcast %cst_18 : f32 to vector<16x1xf32>
    %50 = arith.select %47, %36, %49 : vector<16x1xi1>, vector<16x1xf32>
    %51 = vector.shape_cast %50 : vector<16x1xf32> to vector<1x16x1xf32>
    %cst_19 = arith.constant dense<0.000000e+00> : vector<1xf32>
    %52 = vector.multi_reduction <add>, %51, %cst_19 [1, 2] : vector<1x16x1xf32> to vector<1xf32>
    %53 = vector.shape_cast %52 : vector<1xf32> to vector<1x1x1xf32>
    %54 = vector.extract %53[0, 0, 0] : f32 from vector<1x1x1xf32>
    %55 = vector.broadcast %54 : f32 to vector<1x8x128xf32>
    %56 = arith.addf %48, %55 : vector<1x8x128xf32>
    %c0_20 = arith.constant 0 : index
    %c0_21 = arith.constant 0 : index
    %c0_22 = arith.constant 0 : index
    %57 = vector.load %arg4[%c0_20, %c0_21, %c0_22] : memref<1x8x128xf32, #tpu.memory_space<vmem>>, vector<1x8x128xf32>
    tpu.vector_store %arg4[%c0_20, %c0_21, %c0_22], %56 {strides = array<i32>} : memref<1x8x128xf32, #tpu.memory_space<vmem>>, vector<1x8x128xf32>,
    return
  }
  func.func @transform_0(%arg0: i32, %arg1: i32) -> (i32, i32) {
    %c1_i32 = arith.constant 1 : i32
    %0 = arith.muli %arg0, %c1_i32 : i32
    %1 = arith.addi %0, %arg1 : i32
    %c0_i32 = arith.constant 0 : i32
    %2 = arith.minsi %1, %c0_i32 : i32
    %c0_i32_0 = arith.constant 0 : i32
    %c0_i32_1 = arith.constant 0 : i32
    return %2, %c0_i32_0 : i32, i32
  }
  func.func @transform_1(%arg0: i32, %arg1: i32) -> (i32, i32) {
    %c1_i32 = arith.constant 1 : i32
    %0 = arith.muli %arg0, %c1_i32 : i32
    %1 = arith.addi %0, %arg1 : i32
    %c0_i32 = arith.constant 0 : i32
    %2 = arith.minsi %1, %c0_i32 : i32
    %c0_i32_0 = arith.constant 0 : i32
    %c0_i32_1 = arith.constant 0 : i32
    return %2, %c0_i32_0 : i32, i32
  }
  func.func @transform_2(%arg0: i32, %arg1: i32) -> (i32, i32, i32) {
    %c0_i32 = arith.constant 0 : i32
    %c0_i32_0 = arith.constant 0 : i32
    %c0_i32_1 = arith.constant 0 : i32
    return %arg0, %c0_i32, %c0_i32_0 : i32, i32, i32
  }
}

</mosaic_0001>

<llo_original>
// kernel: tpu_custom_call.1
$region0: #{tpu_custom_call.1}
  #allocation0 [shape = 'u32[]', space=smem, size = 0x4, offset = 0x4, fixed_abs, tag = 'smem constant byte address 0x4 - core index']
  #allocation1 [shape = 'u32[72,128]{1,0:T(1,128)}', space=vmem, size = 0x9000, scoped, tag = 'internal scratch']
  %s0 = inlined_call_operand.vmem [shape: f32[16,32], index: 0, kind: input, shape index: {}]
  %s1 = inlined_call_operand.vmem [shape: s32[16,1], index: 1, kind: input, shape index: {}]
  %s2 = inlined_call_operand.hbm [shape: f32[1,8,128], index: 2, kind: output, shape index: {}]
  %s3 = sld [smem:[#allocation0]]
  $region22: #{tpu_custom_call.1} parent=0
    _
  %s5 = ssub.s32 1, %s3
  %s6 = scalar_select 0, %s5, %s3
  $region1: #{tpu_custom_call.1} parent=0
    #allocation2 [shape = 'u8[4096]{0}', space=vmem, size = 0x1000, scoped, tag = 'output window, operand 0, single buffered']
    #allocation3 [shape = 's32[1]{0}', space=sflag, size = 0x4, scoped, tag = 'scoped memory for tpu_custom_call.1']
    %7 = vsyncpa [#allocation3], 0
    // Predicated region
    $region2: #{tpu_custom_call.1} parent=1 // pred_check
      _
    $region3: #{tpu_custom_call.1} parent=1 // pred_check_branch
      %9 = sbr.rel (0) target = $region5
    $region4: #{tpu_custom_call.1} parent=1 // pred_region
      %s10 = sadd.s32 0, 0
      %p11 = scmp.lt.s32.totalorder %s10, 0
      %s12 = scalar_select %p11, %s10, 0
      %s13 = smul.u32 2, %s12
      %p14 = scmp.lt.s32.totalorder %s13, 1
      %s15 = scalar_select %p14, %s13, 1
      %s16 = smul.addr %s15, 8
      %s17 = scalar_lea.vmem %s0, %s16
      %s18 = sadd.s32 0, 0
      %p19 = scmp.lt.s32.totalorder %s18, 0
      %s20 = scalar_select %p19, %s18, 0
      %s21 = smul.u32 2, %s20
    $region5: #{tpu_custom_call.1} parent=1 // pred_fallthru
      _
    // Predicated region
    $region6: #{tpu_custom_call.1} parent=1 // pred_check
      _
    $region7: #{tpu_custom_call.1} parent=1 // pred_check_branch
      %23 = sbr.rel (0) target = $region9
    $region8: #{tpu_custom_call.1} parent=1 // pred_region
      %s24 = sadd.s32 0, 0
      %p25 = scmp.lt.s32.totalorder %s24, 0
      %s26 = scalar_select %p25, %s24, 0
      %s27 = smul.u32 2, %s26
      %p28 = scmp.lt.s32.totalorder %s27, 1
      %s29 = scalar_select %p28, %s27, 1
      %s30 = smul.addr %s29, 8
      %s31 = scalar_lea.vmem %s1, %s30
      %s32 = sadd.s32 0, 0
      %p33 = scmp.lt.s32.totalorder %s32, 0
      %s34 = scalar_select %p33, %s32, 0
      %s35 = smul.u32 2, %s34
    $region9: #{tpu_custom_call.1} parent=1 // pred_fallthru
      _
    %s36 = sadd.s32 0, 0
    %p37 = scmp.lt.s32.totalorder %s36, 0
    %s38 = scalar_select %p37, %s36, 0
    %s39 = smul.u32 2, %s38
    %p40 = scmp.lt.s32.totalorder %s39, 1
    %s41 = scalar_select %p40, %s39, 1
    %s42 = smul.addr %s41, 8
    %s43 = scalar_lea.vmem %s0, %s42
    %s44 = sadd.s32 0, 0
    %p45 = scmp.lt.s32.totalorder %s44, 0
    %s46 = scalar_select %p45, %s44, 0
    %s47 = smul.u32 2, %s46
    %p48 = scmp.lt.s32.totalorder %s47, 1
    %s49 = scalar_select %p48, %s47, 1
    %s50 = smul.addr %s49, 8
    %s51 = scalar_lea.vmem %s1, %s50
    %s52 = sadd.s32 0, 0
    %p53 = scmp.lt.s32.totalorder %s52, 0
    %s54 = scalar_select %p53, %s52, 0
    %s55 = smul.u32 2, %s54
    %p56 = scmp.lt.s32.totalorder %s55, 1
    %s57 = scalar_select %p56, %s55, 1
    %s58 = smul.addr %s57, 8
    %s59 = scalar_lea.vmem %s0, %s58
    %s60 = sadd.s32 0, 0
    %p61 = scmp.lt.s32.totalorder %s60, 0
    %s62 = scalar_select %p61, %s60, 0
    %s63 = smul.u32 2, %s62
    %s64 = sadd.s32 0, 0
    %p65 = scmp.lt.s32.totalorder %s64, 0
    %s66 = scalar_select %p65, %s64, 0
    %s67 = smul.u32 2, %s66
    %p68 = scmp.lt.s32.totalorder %s67, 1
    %s69 = scalar_select %p68, %s67, 1
    %s70 = smul.addr %s69, 8
    %s71 = scalar_lea.vmem %s1, %s70
    %s72 = sadd.s32 0, 0
    %p73 = scmp.lt.s32.totalorder %s72, 0
    %s74 = scalar_select %p73, %s72, 0
    %s75 = smul.u32 2, %s74
    %p76 = scmp.eq.s32.totalorder 0, 0
    // Predicated region
    $region10: #{tpu_custom_call.1} parent=1 // pred_check
      %p77 = pneg %p76
    $region11: #{tpu_custom_call.1} parent=1 // pred_check_branch
      %79 = sbr.rel (%p77) target = $region13
    $region12: #{tpu_custom_call.1} parent=1 // pred_region
      %80 = vst [vmem:[#allocation2] sm:$0xff] 0.0
    $region13: #{tpu_custom_call.1} parent=1 // pred_fallthru
      _
    %v81 = vld [vmem:[%s59] sm:$0xff]
    %v82 = vld [vmem:[%s59 + $0x8] sm:$0xff]
    %v83 = vld [vmem:[%s71] sm:$0xff]
    %v84 = vld [vmem:[%s71 + $0x8] sm:$0xff]
    %vm85 = vcmask 261120
    %v86 = vsel %vm85, %v81, -inf
    %87 = vmax.xlane.f32.xlu0 %v86
    %v88 = vpop.xlane.xlu0 %87
    %v89 = vsel %vm85, %v82, -inf
    %90 = vmax.xlane.f32.xlu0 %v89
    %v91 = vpop.xlane.xlu0 %90
    %v92 = vsub.f32 %v81, %v88
    %v93 = vsub.f32 %v82, %v91
    %v94 = vmul.f32 %v92, 1.442695
    %v95 = vpow.pop %v94
    %v96 = vmul.f32 %v93, 1.442695
    %v97 = vpow.pop %v96
    %v98 = vsel %vm85, %v95, 0.0
    %99 = vadd.xlane.f32.xlu0 %v98
    %v100 = vpop.xlane.xlu0 %99
    %v101 = vsel %vm85, %v97, 0.0
    %102 = vadd.xlane.f32.xlu0 %v101
    %v103 = vpop.xlane.xlu0 %102
    %v104 = vlog2.pop %v100
    %v105 = vmul.f32 %v104, 0.6931472
    %v106 = vlog2.pop %v103
    %v107 = vmul.f32 %v106, 0.6931472
    %v108 = vadd.f32 %v105, %v88
    %v109 = vadd.f32 %v107, %v91
    %v110 = vsel %vm85, %v81, 0.0
    %111 = vadd.xlane.f32.xlu0 %v110
    %v112 = vpop.xlane.xlu0 %111
    %v113 = vsel %vm85, %v82, 0.0
    %114 = vadd.xlane.f32.xlu0 %v113
    %v115 = vpop.xlane.xlu0 %114
    %v116 = vlaneseq
    %v117 = vand.u32 %v116, 127
    %118 = vset.pattern.permute.xlu0 0
    %119 = vperm.xlu0 %118, %v83
    %v120 = vpop.permute.xlu0 %119
    %121 = vset.pattern.permute.xlu0 0
    %122 = vperm.xlu0 %121, %v84
    %v123 = vpop.permute.xlu0 %122
    %vm124 = vcmp.eq.s32.totalorder %v117, %v120
    %vm125 = vcmp.eq.s32.totalorder %v117, %v123
    %v126 = vsel %vm124, %v81, 0.0
    %v127 = vsel %vm125, %v82, 0.0
    %v128 = vsel %vm85, %v126, 0.0
    %129 = vadd.xlane.f32.xlu0 %v128
    %v130 = vpop.xlane.xlu0 %129
    %v131 = vsel %vm85, %v127, 0.0
    %132 = vadd.xlane.f32.xlu0 %v131
    %v133 = vpop.xlane.xlu0 %132
    %v134 = vadd.f32 %v108, -0.66520274
    %v135 = vadd.f32 %v109, -0.66520274
    %v136 = vmul.f32 %v130, 0.89666665
    %v137 = vmul.f32 %v133, 0.89666665
    %v138 = vsub.f32 %v134, %v136
    %v139 = vsub.f32 %v135, %v137
    %v140 = vmul.f32 %v112, 0.0033333334
    %v141 = vmul.f32 %v115, 0.0033333334
    %v142 = vsub.f32 %v138, %v140
    %v143 = vsub.f32 %v139, %v141
    %v144 = vmul.f32 %v81, 0.0033333334
    %v145 = vmul.f32 %v82, 0.0033333334
    %v146 = vadd.f32 %v142, %v144
    %v147 = vadd.f32 %v143, %v145
    %s148 = sadd.s32 0, 0
    %s149 = smul.u32 %s148, 16
    %v150 = vlaneseq
    %v151 = vshrl.u32 %v150, 7
    %v152 = vadd.s32 %v151, 8
    %v153 = vstv %s149
    %v154 = vadd.s32 %v153, %v151
    %v155 = vadd.s32 %v153, %v152
    %vm156 = vcmp.ne.s32.totalorder %v83, 0
    %vm157 = vcmp.ne.s32.totalorder %v84, 0
    %vm158 = vcmp.lt.s32.totalorder %v154, 16
    %vm159 = vcmp.lt.s32.totalorder %v155, 16
    %vm160 = vmand %vm156, %vm158
    %vm161 = vmand %vm157, %vm159
    %v162 = vld [vmem:[#allocation2] sm:$0xff]
    %v163 = vsel %vm160, %v146, 0.0
    %v164 = vsel %vm161, %v147, 0.0
    %vm165 = vcmask 7168
    %v166 = vsel %vm165, %v163, 0.0
    %v167 = vsel %vm165, %v164, 0.0
    %v168 = vadd.f32 %v166, %v167
    %169 = vadd.xlane.f32.xlu0 %v168
    %v170 = vpop.xlane.xlu0 %169
    %v171 = vrot.slane %v170, 4
    %v172 = vadd.f32 %v170, %v171
    %v173 = vrot.slane %v172, 2
    %v174 = vadd.f32 %v172, %v173
    %v175 = vrot.slane %v174, 1
    %v176 = vadd.f32 %v174, %v175
    %s177 = vtos %v176
    %v178 = vstv %s177
    %v179 = vadd.f32 %v162, %v178
    %180 = vst [vmem:[#allocation2] sm:$0xff] %v179
    // Predicated region
    $region14: #{tpu_custom_call.1} parent=1 // pred_check
      _
    $region15: #{tpu_custom_call.1} parent=1 // pred_check_branch
      %182 = sbr.rel (0) target = $region17
    $region16: #{tpu_custom_call.1} parent=1 // pred_region
      %184 = vsyncadd [#allocation3], 0
      %s186 = sshll.u32 [#allocation2], 4
      %s187 = int_to_ptr.vmem [resolvable:$true] %s186
      %s188 = sshll.u32 %s2, 4
      %s189 = int_to_ptr.hbm [resolvable:$true] %s188
      %191 = dma.vmem_to_hbm [thread:$0]  %s187, 128, %s189, [#allocation3]
    $region17: #{tpu_custom_call.1} parent=1 // pred_fallthru
      _
    // Predicated region
    $region18: #{tpu_custom_call.1} parent=1 // pred_check
      _
    $region19: #{tpu_custom_call.1} parent=1 // pred_check_branch
      %193 = sbr.rel (0) target = $region21
    $region20: #{tpu_custom_call.1} parent=1 // pred_region
      %195 = dma.done [#allocation3], 128
    $region21: #{tpu_custom_call.1} parent=1 // pred_fallthru
      _
    %196 = vsyncpa [#allocation3], 1

</llo_original>
